<compile_context>
chip_gen: v6e
topology: v6e:2x2x1
jax: 0.10.0
libtpu: 0.0.40
codegen_flags: <defaults>
</compile_context>

<pallas_src>
import jax
import jax.numpy as jnp
from jax.experimental import pallas as pl
from jax.experimental.pallas import tpu as pltpu


def _leaky_relu(x, alpha=0.2):
    return jnp.where(x >= 0, x, alpha * x)


def discriminator_kernel(xt_ref, w0_ref, b0_ref, w1_ref, b1_ref,
                         w2_ref, b2_ref, w3_ref, b3_ref, o_ref):
    """Transposed-orientation forward: h^T = W @ x^T, batch along lanes.

    xt_ref : (n_in, TB) bf16          batch-tiled input, batch on the lane axis
    w0..w2 : (out_l, in_l) bf16       PyTorch (out, in) layout, unpadded
    b0..b2 : (out_l, 1) f32
    w3     : (in3, 1) f32             pre-transposed single-row output layer
    b3     : (1, 1) f32
    o_ref  : (1, TB) f32              lane-dense output slab
    """
    xt = xt_ref[...]                                           # (n_in, TB) bf16

    # hidden0: (out0, in0) @ (in0, TB) on the MXU, f32 accumulate.
    h = jnp.dot(w0_ref[...], xt,
                preferred_element_type=jnp.float32) + b0_ref[...]
    h = _leaky_relu(h)
    # TODO(synk): Dropout(0.3) is eval-mode identity here; training-mode
    #             stochastic masking (pltpu.prng_seed / prng_random_bits) is
    #             not implemented.

    # hidden1
    h = jnp.dot(w1_ref[...], h.astype(jnp.bfloat16),
                preferred_element_type=jnp.float32) + b1_ref[...]
    h = _leaky_relu(h)

    # hidden2
    h = jnp.dot(w2_ref[...], h.astype(jnp.bfloat16),
                preferred_element_type=jnp.float32) + b2_ref[...]
    h = _leaky_relu(h)

    # out: single-row linear -> VPU multiply + sublane (XLU) reduce, in f32.
    z = jnp.sum(w3_ref[...] * h, axis=0, keepdims=True) + b3_ref[...]
    o_ref[...] = jax.nn.sigmoid(z).astype(o_ref.dtype)


def prepare_params(params):
    """One-time conversion of PyTorch-layout params into kernel inputs.

    Weights of the MXU layers -> bf16 (f32 accumulation in the kernel); biases
    stay f32 as (out, 1) columns; the 1-row output layer stays f32 and is
    pre-transposed to (in3, 1) for the VPU/XLU path. No zero padding anywhere.
    """
    ws = [jnp.asarray(params[f"w{i}"], jnp.float32) for i in range(4)]
    bs = [jnp.asarray(params[f"b{i}"], jnp.float32) for i in range(4)]
    # Layer-chain consistency (out_l of layer l == in of layer l+1).
    for l in range(3):
        assert ws[l].shape[0] == ws[l + 1].shape[1], "layer dim chain mismatch"
    assert ws[3].shape[0] == 1, "output layer must have a single row"
    return (
        ws[0].astype(jnp.bfloat16), bs[0].reshape(-1, 1),
        ws[1].astype(jnp.bfloat16), bs[1].reshape(-1, 1),
        ws[2].astype(jnp.bfloat16), bs[2].reshape(-1, 1),
        ws[3].T,                                   # (in3, 1) f32
        bs[3].reshape(1, 1),                       # (1, 1)  f32
    )


def _pick_batch_tile(batch, *, max_tb=512):
    """>=2 tiles when batch >= 256 (both TensorCores on v7x), lane multiples of
    128, capped so bf16/f32 intermediates stay inside a 32 MiB VMEM budget."""
    if batch < 256:
        return batch                               # single full-array tile
    half = -(-batch // 2)                          # cdiv(batch, 2)
    tb = ((half + 127) // 128) * 128               # round up to lane multiple
    return max(128, min(max_tb, tb))


def _resident_spec(arr):
    """Full-array block + constant index_map: DMA'd once, stays resident in
    VMEM across every batch tile (grid-invariant)."""
    return pl.BlockSpec(arr.shape, lambda i: (0,) * arr.ndim)


def discriminator_forward(x, packed, *, max_tb=512):
    """x: (batch, n_in) f32; packed: output of prepare_params()."""
    batch, n_in = x.shape
    w0, b0, w1, b1, w2, b2, w3, b3 = packed
    assert w0.shape[1] == n_in, "input feature dim mismatch"

    # One-time layout move in the wrapper: batch onto the lane axis, bf16 at
    # the MXU input (halves the activation DMA bytes too).
    xt = jnp.transpose(x).astype(jnp.bfloat16)     # (n_in, batch)

    tb = _pick_batch_tile(batch, max_tb=max_tb)
    grid = (pl.cdiv(batch, tb),)

    dims = [(w0.shape[1], w0.shape[0]), (w1.shape[1], w1.shape[0]),
            (w2.shape[1], w2.shape[0]), (w3.shape[0], 1)]
    flops = 2 * batch * sum(i * o for i, o in dims)
    bytes_accessed = (xt.size * 2
                      + sum(int(a.size) * a.dtype.itemsize for a in packed)
                      + batch * 4)
    cost = pl.CostEstimate(flops=flops, transcendentals=batch,
                           bytes_accessed=bytes_accessed)

    out_t = pl.pallas_call(
        discriminator_kernel,
        out_shape=jax.ShapeDtypeStruct((1, batch), jnp.float32),
        grid=grid,
        in_specs=[
            pl.BlockSpec((n_in, tb), lambda i: (0, i)),   # batch-tiled input
            _resident_spec(w0), _resident_spec(b0),
            _resident_spec(w1), _resident_spec(b1),
            _resident_spec(w2), _resident_spec(b2),
            _resident_spec(w3), _resident_spec(b3),
        ],
        out_specs=pl.BlockSpec((1, tb), lambda i: (0, i)),  # lane-dense output
        compiler_params=pltpu.CompilerParams(
            dimension_semantics=("parallel",),              # 2 TCs on v7x
            vmem_limit_bytes=32 * 1024 * 1024),
        cost_estimate=cost,
    )(xt, w0, b0, w1, b1, w2, b2, w3, b3)
    return out_t.reshape(batch, 1)                          # (1, batch) -> (batch, 1)


def init_params(key, n_features, ndf, pack_num=1):
    """Deterministic init matching the module's layer shapes (PyTorch layout)."""
    dims = [
        (ndf, n_features * pack_num),   # hidden0
        (ndf // 2, ndf),                # hidden1
        (ndf // 4, ndf // 2),           # hidden2
        (1, ndf // 4),                  # out
    ]
    params = {}
    for i, (fan_out, fan_in) in enumerate(dims):
        key, kw, kb = jax.random.split(key, 3)
        bound = 1.0 / jnp.sqrt(fan_in)
        params[f"w{i}"] = jax.random.uniform(
            kw, (fan_out, fan_in), jnp.float32, -bound, bound)
        params[f"b{i}"] = jax.random.uniform(
            kb, (fan_out,), jnp.float32, -bound, bound)
    return params


def reference_forward(x, params):
    """Pure-JAX f32 reference of the same forward pass (eval-mode dropout)."""
    h = x
    for i in range(3):
        h = h @ params[f"w{i}"].T + params[f"b{i}"]
        h = jnp.where(h >= 0, h, 0.2 * h)
    logits = h @ params["w3"].T + params["b3"]
    return jax.nn.sigmoid(logits)


if __name__ == "__main__":
    base_key = jax.random.PRNGKey(0)

    def run_case(case_id, batch, n_features, ndf, pack_num=1):
        key = jax.random.fold_in(base_key, case_id)
        kx, kp = jax.random.split(key)
        x = jax.random.normal(kx, (batch, n_features * pack_num), jnp.float32)
        params = init_params(kp, n_features, ndf, pack_num)
        packed = prepare_params(params)            # one-time, not per call
        out = jax.block_until_ready(discriminator_forward(x, packed))
        ref = reference_forward(x, params)
        assert out.shape == (batch, 1)
        # bf16 MXU inputs with f32 accumulation -> loosened tolerance.
        assert jnp.allclose(out, ref, atol=2e-2, rtol=2e-2), (
            f"mismatch vs reference (batch={batch}, ndf={ndf})")

    # Tiny config: grid=(1,), whole batch in one tile.
    run_case(0, batch=8, n_features=32, ndf=32)
    # Multi-tile: grid=(2,) of 128-row tiles -> resident weights reused.
    run_case(1, batch=256, n_features=32, ndf=64)
    # Non-divisible batch: grid=(2,), partial last tile.
    run_case(2, batch=320, n_features=48, ndf=64)

    print("KERNEL_OK")
</pallas_src>

<mosaic_0001>
module attributes {stable_mosaic.version = 11 : i64} {
  func.func @discriminator_kernel(%arg0: i32, %arg1: memref<32x8xbf16, #tpu.memory_space<vmem>>, %arg2: memref<32x32xbf16, #tpu.memory_space<vmem>>, %arg3: memref<32x1xf32, #tpu.memory_space<vmem>>, %arg4: memref<16x32xbf16, #tpu.memory_space<vmem>>, %arg5: memref<16x1xf32, #tpu.memory_space<vmem>>, %arg6: memref<8x16xbf16, #tpu.memory_space<vmem>>, %arg7: memref<8x1xf32, #tpu.memory_space<vmem>>, %arg8: memref<8x1xf32, #tpu.memory_space<vmem>>, %arg9: memref<1x1xf32, #tpu.memory_space<vmem>>, %arg10: memref<1x8xf32, #tpu.memory_space<vmem>>) attributes {dimension_semantics = [#tpu.dimension_semantics<parallel>], iteration_bounds = array<i64: 1>, scalar_prefetch = 0 : i64, scratch_operands = 0 : i64, tpu.core_type = #tpu.core_type<tc>, window_params = [{transform_indices = @transform_0, window_bounds = array<i64: 32, 8>}, {pipeline_mode = #tpu.pipeline_mode<synchronous>, transform_indices = @transform_1, window_bounds = array<i64: 32, 32>}, {pipeline_mode = #tpu.pipeline_mode<synchronous>, transform_indices = @transform_2, window_bounds = array<i64: 32, 1>}, {pipeline_mode = #tpu.pipeline_mode<synchronous>, transform_indices = @transform_3, window_bounds = array<i64: 16, 32>}, {pipeline_mode = #tpu.pipeline_mode<synchronous>, transform_indices = @transform_4, window_bounds = array<i64: 16, 1>}, {pipeline_mode = #tpu.pipeline_mode<synchronous>, transform_indices = @transform_5, window_bounds = array<i64: 8, 16>}, {pipeline_mode = #tpu.pipeline_mode<synchronous>, transform_indices = @transform_6, window_bounds = array<i64: 8, 1>}, {pipeline_mode = #tpu.pipeline_mode<synchronous>, transform_indices = @transform_7, window_bounds = array<i64: 8, 1>}, {pipeline_mode = #tpu.pipeline_mode<synchronous>, transform_indices = @transform_8, window_bounds = array<i64: 1, 1>}, {transform_indices = @transform_9, window_bounds = array<i64: 1, 8>}]} {
    %c0 = arith.constant 0 : index
    %c0_0 = arith.constant 0 : index
    %0 = vector.load %arg1[%c0, %c0_0] : memref<32x8xbf16, #tpu.memory_space<vmem>>, vector<32x8xbf16>
    %c0_1 = arith.constant 0 : index
    %c0_2 = arith.constant 0 : index
    %1 = vector.load %arg2[%c0_1, %c0_2] : memref<32x32xbf16, #tpu.memory_space<vmem>>, vector<32x32xbf16>
    %cst = arith.constant dense<0.000000e+00> : vector<32x8xf32>
    %2 = tpu.matmul %1, %0, %cst {dimension_numbers = #tpu.dot_dimension_numbers<[1], [0], [0], [1], [0, 0, 1, 1], [], []>} : vector<32x32xbf16>, vector<32x8xbf16>, vector<32x8xf32> -> vector<32x8xf32>
    %c0_3 = arith.constant 0 : index
    %c0_4 = arith.constant 0 : index
    %3 = vector.load %arg3[%c0_3, %c0_4] : memref<32x1xf32, #tpu.memory_space<vmem>>, vector<32x1xf32>
    %4 = vector.broadcast %3 : vector<32x1xf32> to vector<32x8xf32>
    %5 = arith.addf %2, %4 : vector<32x8xf32>
    %cst_5 = arith.constant 0.000000e+00 : f32
    %6 = vector.broadcast %cst_5 : f32 to vector<32x8xf32>
    %7 = arith.cmpf oge, %5, %6 : vector<32x8xf32>
    %cst_6 = arith.constant 2.000000e-01 : f32
    %8 = vector.broadcast %cst_6 : f32 to vector<32x8xf32>
    %9 = arith.mulf %8, %5 : vector<32x8xf32>
    %10 = arith.select %7, %5, %9 : vector<32x8xi1>, vector<32x8xf32>
    %c0_7 = arith.constant 0 : index
    %c0_8 = arith.constant 0 : index
    %11 = vector.load %arg4[%c0_7, %c0_8] : memref<16x32xbf16, #tpu.memory_space<vmem>>, vector<16x32xbf16>
    %12 = arith.truncf %10 : vector<32x8xf32> to vector<32x8xbf16>
    %cst_9 = arith.constant dense<0.000000e+00> : vector<16x8xf32>
    %13 = tpu.matmul %11, %12, %cst_9 {dimension_numbers = #tpu.dot_dimension_numbers<[1], [0], [0], [1], [0, 0, 1, 1], [], []>} : vector<16x32xbf16>, vector<32x8xbf16>, vector<16x8xf32> -> vector<16x8xf32>
    %c0_10 = arith.constant 0 : index
    %c0_11 = arith.constant 0 : index
    %14 = vector.load %arg5[%c0_10, %c0_11] : memref<16x1xf32, #tpu.memory_space<vmem>>, vector<16x1xf32>
    %15 = vector.broadcast %14 : vector<16x1xf32> to vector<16x8xf32>
    %16 = arith.addf %13, %15 : vector<16x8xf32>
    %cst_12 = arith.constant 0.000000e+00 : f32
    %17 = vector.broadcast %cst_12 : f32 to vector<16x8xf32>
    %18 = arith.cmpf oge, %16, %17 : vector<16x8xf32>
    %cst_13 = arith.constant 2.000000e-01 : f32
    %19 = vector.broadcast %cst_13 : f32 to vector<16x8xf32>
    %20 = arith.mulf %19, %16 : vector<16x8xf32>
    %21 = arith.select %18, %16, %20 : vector<16x8xi1>, vector<16x8xf32>
    %c0_14 = arith.constant 0 : index
    %c0_15 = arith.constant 0 : index
    %22 = vector.load %arg6[%c0_14, %c0_15] : memref<8x16xbf16, #tpu.memory_space<vmem>>, vector<8x16xbf16>
    %23 = arith.truncf %21 : vector<16x8xf32> to vector<16x8xbf16>
    %cst_16 = arith.constant dense<0.000000e+00> : vector<8x8xf32>
    %24 = tpu.matmul %22, %23, %cst_16 {dimension_numbers = #tpu.dot_dimension_numbers<[1], [0], [0], [1], [0, 0, 1, 1], [], []>} : vector<8x16xbf16>, vector<16x8xbf16>, vector<8x8xf32> -> vector<8x8xf32>
    %c0_17 = arith.constant 0 : index
    %c0_18 = arith.constant 0 : index
    %25 = vector.load %arg7[%c0_17, %c0_18] : memref<8x1xf32, #tpu.memory_space<vmem>>, vector<8x1xf32>
    %26 = vector.broadcast %25 : vector<8x1xf32> to vector<8x8xf32>
    %27 = arith.addf %24, %26 : vector<8x8xf32>
    %cst_19 = arith.constant 0.000000e+00 : f32
    %28 = vector.broadcast %cst_19 : f32 to vector<8x8xf32>
    %29 = arith.cmpf oge, %27, %28 : vector<8x8xf32>
    %cst_20 = arith.constant 2.000000e-01 : f32
    %30 = vector.broadcast %cst_20 : f32 to vector<8x8xf32>
    %31 = arith.mulf %30, %27 : vector<8x8xf32>
    %32 = arith.select %29, %27, %31 : vector<8x8xi1>, vector<8x8xf32>
    %c0_21 = arith.constant 0 : index
    %c0_22 = arith.constant 0 : index
    %33 = vector.load %arg8[%c0_21, %c0_22] : memref<8x1xf32, #tpu.memory_space<vmem>>, vector<8x1xf32>
    %34 = vector.broadcast %33 : vector<8x1xf32> to vector<8x8xf32>
    %35 = arith.mulf %34, %32 : vector<8x8xf32>
    %cst_23 = arith.constant dense<0.000000e+00> : vector<8xf32>
    %36 = vector.multi_reduction <add>, %35, %cst_23 [0] : vector<8x8xf32> to vector<8xf32>
    %37 = vector.shape_cast %36 : vector<8xf32> to vector<1x8xf32>
    %c0_24 = arith.constant 0 : index
    %c0_25 = arith.constant 0 : index
    %38 = vector.load %arg9[%c0_24, %c0_25] : memref<1x1xf32, #tpu.memory_space<vmem>>, vector<1x1xf32>
    %39 = vector.broadcast %38 : vector<1x1xf32> to vector<1x8xf32>
    %40 = arith.addf %37, %39 : vector<1x8xf32>
    %41 = arith.negf %40 : vector<1x8xf32>
    %42 = math.exp %41 : vector<1x8xf32>
    %cst_26 = arith.constant 1.000000e+00 : f32
    %43 = vector.broadcast %cst_26 : f32 to vector<1x8xf32>
    %44 = arith.addf %43, %42 : vector<1x8xf32>
    %45 = arith.divf %43, %44 : vector<1x8xf32>
    %c0_27 = arith.constant 0 : index
    %c0_28 = arith.constant 0 : index
    %46 = vector.load %arg10[%c0_27, %c0_28] : memref<1x8xf32, #tpu.memory_space<vmem>>, vector<1x8xf32>
    tpu.vector_store %arg10[%c0_27, %c0_28], %45 {strides = array<i32>} : memref<1x8xf32, #tpu.memory_space<vmem>>, vector<1x8xf32>,
    return
  }
  func.func @transform_0(%arg0: i32) -> (i32, i32) {
    %c0_i32 = arith.constant 0 : i32
    %c0_i32_0 = arith.constant 0 : i32
    return %c0_i32, %arg0 : i32, i32
  }
  func.func @transform_1(%arg0: i32) -> (i32, i32) {
    %c0_i32 = arith.constant 0 : i32
    %c0_i32_0 = arith.constant 0 : i32
    %c0_i32_1 = arith.constant 0 : i32
    return %c0_i32, %c0_i32_0 : i32, i32
  }
  func.func @transform_2(%arg0: i32) -> (i32, i32) {
    %c0_i32 = arith.constant 0 : i32
    %c0_i32_0 = arith.constant 0 : i32
    %c0_i32_1 = arith.constant 0 : i32
    return %c0_i32, %c0_i32_0 : i32, i32
  }
  func.func @transform_3(%arg0: i32) -> (i32, i32) {
    %c0_i32 = arith.constant 0 : i32
    %c0_i32_0 = arith.constant 0 : i32
    %c0_i32_1 = arith.constant 0 : i32
    return %c0_i32, %c0_i32_0 : i32, i32
  }
  func.func @transform_4(%arg0: i32) -> (i32, i32) {
    %c0_i32 = arith.constant 0 : i32
    %c0_i32_0 = arith.constant 0 : i32
    %c0_i32_1 = arith.constant 0 : i32
    return %c0_i32, %c0_i32_0 : i32, i32
  }
  func.func @transform_5(%arg0: i32) -> (i32, i32) {
    %c0_i32 = arith.constant 0 : i32
    %c0_i32_0 = arith.constant 0 : i32
    %c0_i32_1 = arith.constant 0 : i32
    return %c0_i32, %c0_i32_0 : i32, i32
  }
  func.func @transform_6(%arg0: i32) -> (i32, i32) {
    %c0_i32 = arith.constant 0 : i32
    %c0_i32_0 = arith.constant 0 : i32
    %c0_i32_1 = arith.constant 0 : i32
    return %c0_i32, %c0_i32_0 : i32, i32
  }
  func.func @transform_7(%arg0: i32) -> (i32, i32) {
    %c0_i32 = arith.constant 0 : i32
    %c0_i32_0 = arith.constant 0 : i32
    %c0_i32_1 = arith.constant 0 : i32
    return %c0_i32, %c0_i32_0 : i32, i32
  }
  func.func @transform_8(%arg0: i32) -> (i32, i32) {
    %c0_i32 = arith.constant 0 : i32
    %c0_i32_0 = arith.constant 0 : i32
    %c0_i32_1 = arith.constant 0 : i32
    return %c0_i32, %c0_i32_0 : i32, i32
  }
  func.func @transform_9(%arg0: i32) -> (i32, i32) {
    %c0_i32 = arith.constant 0 : i32
    %c0_i32_0 = arith.constant 0 : i32
    return %c0_i32, %arg0 : i32, i32
  }
}

</mosaic_0001>

<llo_original>
// kernel: tpu_custom_call.1
$region0: #{tpu_custom_call.1}
  #allocation0 [shape = 'u32[]', space=smem, size = 0x4, offset = 0x4, fixed_abs, tag = 'smem constant byte address 0x4 - core index']
  #allocation1 [shape = 'u32[144,128]{1,0:T(1,128)}', space=vmem, size = 0x12000, scoped, tag = 'internal scratch']
  #allocation2 [shape = 'f32[1,1]{1,0:T(1,128)S(1)}', space=vmem, size = 0x200, scoped, tag = 'scoped memory for tpu_custom_call.1']
  %s0 = inlined_call_operand.vmem [shape: bf16[32,8], index: 0, kind: input, shape index: {}]
  %s1 = inlined_call_operand.vmem [shape: bf16[32,32], index: 1, kind: input, shape index: {}]
  %s2 = inlined_call_operand.vmem [shape: f32[32,1], index: 2, kind: input, shape index: {}]
  %s3 = inlined_call_operand.vmem [shape: bf16[16,32], index: 3, kind: input, shape index: {}]
  %s4 = inlined_call_operand.vmem [shape: f32[16,1], index: 4, kind: input, shape index: {}]
  %s5 = inlined_call_operand.vmem [shape: bf16[8,16], index: 5, kind: input, shape index: {}]
  %s6 = inlined_call_operand.vmem [shape: f32[8,1], index: 6, kind: input, shape index: {}]
  %s7 = inlined_call_operand.vmem [shape: f32[8,1], index: 7, kind: input, shape index: {}]
  %s8 = inlined_call_operand.<no memory space> [shape: f32[1,1], index: 8, kind: input, shape index: {}]
  %s9 = inlined_call_operand.hbm [shape: f32[1,8], index: 9, kind: output, shape index: {}]
  %s10 = sld [smem:[#allocation0]]
  $region46: #{tpu_custom_call.1} parent=0
    _
  %s12 = ssub.s32 1, %s10
  %s13 = scalar_select 0, %s12, %s10
  %v14 = vstv %s8
  %15 = vst [vmem:[#allocation2] sm:$0x1] %v14
  $region1: #{tpu_custom_call.1} parent=0
    #allocation3 [shape = 'u8[512]{0}', space=vmem, size = 0x400, scoped, tag = 'output window, operand 0, single buffered']
    #allocation4 [shape = 's32[1]{0}', space=sflag, size = 0x4, scoped, tag = 'scoped memory for tpu_custom_call.1']
    %16 = vsyncpa [#allocation4], 0
    // Predicated region
    $region2: #{tpu_custom_call.1} parent=1 // pred_check
      _
    $region3: #{tpu_custom_call.1} parent=1 // pred_check_branch
      %18 = sbr.rel (0) target = $region5
    $region4: #{tpu_custom_call.1} parent=1 // pred_region
      _
    $region5: #{tpu_custom_call.1} parent=1 // pred_fallthru
      _
    // Predicated region
    $region6: #{tpu_custom_call.1} parent=1 // pred_check
      _
    $region7: #{tpu_custom_call.1} parent=1 // pred_check_branch
      %20 = sbr.rel (0) target = $region9
    $region8: #{tpu_custom_call.1} parent=1 // pred_region
      _
    $region9: #{tpu_custom_call.1} parent=1 // pred_fallthru
      _
    // Predicated region
    $region10: #{tpu_custom_call.1} parent=1 // pred_check
      _
    $region11: #{tpu_custom_call.1} parent=1 // pred_check_branch
      %22 = sbr.rel (0) target = $region13
    $region12: #{tpu_custom_call.1} parent=1 // pred_region
      _
    $region13: #{tpu_custom_call.1} parent=1 // pred_fallthru
      _
    // Predicated region
    $region14: #{tpu_custom_call.1} parent=1 // pred_check
      _
    $region15: #{tpu_custom_call.1} parent=1 // pred_check_branch
      %24 = sbr.rel (0) target = $region17
    $region16: #{tpu_custom_call.1} parent=1 // pred_region
      _
    $region17: #{tpu_custom_call.1} parent=1 // pred_fallthru
      _
    // Predicated region
    $region18: #{tpu_custom_call.1} parent=1 // pred_check
      _
    $region19: #{tpu_custom_call.1} parent=1 // pred_check_branch
      %26 = sbr.rel (0) target = $region21
    $region20: #{tpu_custom_call.1} parent=1 // pred_region
      _
    $region21: #{tpu_custom_call.1} parent=1 // pred_fallthru
      _
    // Predicated region
    $region22: #{tpu_custom_call.1} parent=1 // pred_check
      _
    $region23: #{tpu_custom_call.1} parent=1 // pred_check_branch
      %28 = sbr.rel (0) target = $region25
    $region24: #{tpu_custom_call.1} parent=1 // pred_region
      _
    $region25: #{tpu_custom_call.1} parent=1 // pred_fallthru
      _
    // Predicated region
    $region26: #{tpu_custom_call.1} parent=1 // pred_check
      _
    $region27: #{tpu_custom_call.1} parent=1 // pred_check_branch
      %30 = sbr.rel (0) target = $region29
    $region28: #{tpu_custom_call.1} parent=1 // pred_region
      _
    $region29: #{tpu_custom_call.1} parent=1 // pred_fallthru
      _
    // Predicated region
    $region30: #{tpu_custom_call.1} parent=1 // pred_check
      _
    $region31: #{tpu_custom_call.1} parent=1 // pred_check_branch
      %32 = sbr.rel (0) target = $region33
    $region32: #{tpu_custom_call.1} parent=1 // pred_region
      _
    $region33: #{tpu_custom_call.1} parent=1 // pred_fallthru
      _
    // Predicated region
    $region34: #{tpu_custom_call.1} parent=1 // pred_check
      _
    $region35: #{tpu_custom_call.1} parent=1 // pred_check_branch
      %34 = sbr.rel (0) target = $region37
    $region36: #{tpu_custom_call.1} parent=1 // pred_region
      _
    $region37: #{tpu_custom_call.1} parent=1 // pred_fallthru
      _
    %v36 = vld [vmem:[%s0] sm:$0xf]
    %v37 = vld [vmem:[%s0 + $0x4] sm:$0xf]
    %v38 = vld [vmem:[%s0 + $0x8] sm:$0xf]
    %v39 = vld [vmem:[%s0 + $0xc] sm:$0xf]
    %v40 = vld [vmem:[%s1] sm:$0xf]
    %v41 = vld [vmem:[%s1 + $0x4] sm:$0xf]
    %v42 = vld [vmem:[%s1 + $0x8] sm:$0xf]
    %v43 = vld [vmem:[%s1 + $0xc] sm:$0xf]
    %v44 = vld [vmem:[%s2] sm:$0xff]
    %v45 = vld [vmem:[%s2 + $0x8] sm:$0xff]
    %v46 = vld [vmem:[%s2 + $0x10] sm:$0xff]
    %v47 = vld [vmem:[%s2 + $0x18] sm:$0xff]
    %49 = vset.pattern.permute.xlu0 0
    %50 = vperm.xlu0 %49, %v44
    %v51 = vpop.permute.xlu0 %50
    %54 = vset.pattern.permute.xlu0 0
    %55 = vperm.xlu0 %54, %v45
    %v56 = vpop.permute.xlu0 %55
    %59 = vset.pattern.permute.xlu0 0
    %60 = vperm.xlu0 %59, %v46
    %v61 = vpop.permute.xlu0 %60
    %64 = vset.pattern.permute.xlu0 0
    %65 = vperm.xlu0 %64, %v47
    %v66 = vpop.permute.xlu0 %65
    %v72 = vunpack.c.l.b16 %v40
    %v73 = vunpack.c.l.b16 %v41
    %v74 = vunpack.c.l.b16 %v42
    %v75 = vunpack.c.l.b16 %v43
    %v76 = vpack.c.b16 %v73, %v72
    %v77 = vpack.c.b16 %v75, %v74
    %v82 = vunpack.c.l.b16 %v36
    %v83 = vunpack.c.l.b16 %v37
    %v84 = vunpack.c.l.b16 %v38
    %v85 = vunpack.c.l.b16 %v39
    %v86 = vpack.c.b16 %v83, %v82
    %v87 = vpack.c.b16 %v85, %v84
    %vm90 = vcmask 261120
    %v92 = vsel %vm90, %v76, 0
    %v95 = vsel %vm90, %v77, 0
    %97 = vmatprep.subr.bf16.mxu0 0
    %98 = vmatpush1.bf16.msra.mxu0 0
    %99 = vmatprep.subr.bf16.mxu0 0
    %100 = vmatpush1.bf16.msra.mxu0 0
    %101 = vmatprep.subr.bf16.mxu0 0
    %102 = vmatpush1.bf16.msra.mxu0 0
    %103 = vmatprep.subr.bf16.mxu0 0
    %104 = vmatpush1.bf16.msra.mxu0 0
    %105 = vmatprep.subr.bf16.mxu0 0
    %106 = vmatpush1.bf16.msra.mxu0 0
    %107 = vmatprep.subr.bf16.mxu0 0
    %108 = vmatpush1.bf16.msra.mxu0 0
    %109 = vmatprep.subr.bf16.mxu0 0
    %110 = vmatpush1.bf16.msra.mxu0 %v87
    %111 = vmatprep.subr.bf16.mxu0 0
    %112 = vmatpush1.bf16.msra.mxu0 %v86
    %113 = vmatprep.subr.bf16.mxu0 0
    %114 = vmatpush2.bf16.msra.mxu0 0
    %115 = vmatprep.subr.bf16.mxu0 0
    %116 = vmatpush2.bf16.msra.mxu0 0
    %117 = vmatprep.subr.bf16.mxu0 0
    %118 = vmatpush2.bf16.msra.mxu0 0
    %119 = vmatprep.subr.bf16.mxu0 0
    %120 = vmatpush2.bf16.msra.mxu0 0
    %121 = vmatprep.subr.bf16.mxu0 0
    %122 = vmatpush2.bf16.msra.mxu0 0
    %123 = vmatprep.subr.bf16.mxu0 0
    %124 = vmatpush2.bf16.msra.mxu0 0
    %125 = vmatprep.subr.bf16.mxu0 0
    %126 = vmatpush2.bf16.msra.mxu0 0
    %127 = vmatprep.subr.bf16.mxu0 0
    %128 = vmatpush2.bf16.msra.mxu0 0
    %129 = vmatprep.mubr.bf16.mxu0 0
    %130 = vmatmul.mubr.bf16.gmra.mxu0 %v92
    %v131 = vpop.f32.mrf.mxu0
    %v132 = vadd.f32 %v51, %v131
    %v133 = vpop.f32.mrf.mxu0
    %v134 = vpop.f32.mrf.mxu0
    %v135 = vadd.f32 %v56, %v134
    %v136 = vpop.f32.mrf.mxu0
    %137 = vmatprep.mubr.bf16.mxu0 0
    %138 = vmatmul.mubr.bf16.gmra.mxu0 %v95
    %v139 = vpop.f32.mrf.mxu0
    %v140 = vadd.f32 %v61, %v139
    %v141 = vpop.f32.mrf.mxu0
    %v142 = vpop.f32.mrf.mxu0
    %v143 = vadd.f32 %v66, %v142
    %v144 = vpop.f32.mrf.mxu0
    %145 = vdwg.mxu0
    %vm146 = vcmp.ge.f32.partialorder %v132, 0.0
    %vm147 = vcmp.ge.f32.partialorder %v135, 0.0
    %vm148 = vcmp.ge.f32.partialorder %v140, 0.0
    %vm149 = vcmp.ge.f32.partialorder %v143, 0.0
    %v150 = vmul.f32 %v132, 0.2
    %v151 = vmul.f32 %v135, 0.2
    %v152 = vmul.f32 %v140, 0.2
    %v153 = vmul.f32 %v143, 0.2
    %v154 = vsel %vm146, %v132, %v150
    %v155 = vsel %vm147, %v135, %v151
    %v156 = vsel %vm148, %v140, %v152
    %v157 = vsel %vm149, %v143, %v153
    %v158 = vld [vmem:[%s3] sm:$0xf]
    %v159 = vld [vmem:[%s3 + $0x4] sm:$0xf]
    %v160 = vpack.c.bf16 %v155, %v154
    %v161 = vpack.c.bf16 %v157, %v156
    %v162 = vld [vmem:[%s4] sm:$0xff]
    %v163 = vld [vmem:[%s4 + $0x8] sm:$0xff]
    %165 = vset.pattern.permute.xlu0 0
    %166 = vperm.xlu0 %165, %v162
    %v167 = vpop.permute.xlu0 %166
    %170 = vset.pattern.permute.xlu0 0
    %171 = vperm.xlu0 %170, %v163
    %v172 = vpop.permute.xlu0 %171
    %v176 = vunpack.c.l.b16 %v158
    %v177 = vunpack.c.l.b16 %v159
    %v178 = vpack.c.b16 %v177, %v176
    %v180 = vsel %vm90, %v178, 0
    %182 = vmatprep.subr.bf16.mxu0 0
    %183 = vmatpush1.bf16.msra.mxu0 0
    %184 = vmatprep.subr.bf16.mxu0 0
    %185 = vmatpush1.bf16.msra.mxu0 0
    %186 = vmatprep.subr.bf16.mxu0 0
    %187 = vmatpush1.bf16.msra.mxu0 0
    %188 = vmatprep.subr.bf16.mxu0 0
    %189 = vmatpush1.bf16.msra.mxu0 0
    %190 = vmatprep.subr.bf16.mxu0 0
    %191 = vmatpush1.bf16.msra.mxu0 0
    %192 = vmatprep.subr.bf16.mxu0 0
    %193 = vmatpush1.bf16.msra.mxu0 0
    %194 = vmatprep.subr.bf16.mxu0 0
    %195 = vmatpush1.bf16.msra.mxu0 %v161
    %196 = vmatprep.subr.bf16.mxu0 0
    %197 = vmatpush1.bf16.msra.mxu0 %v160
    %198 = vmatprep.subr.bf16.mxu0 0
    %199 = vmatpush2.bf16.msra.mxu0 0
    %200 = vmatprep.subr.bf16.mxu0 0
    %201 = vmatpush2.bf16.msra.mxu0 0
    %202 = vmatprep.subr.bf16.mxu0 0
    %203 = vmatpush2.bf16.msra.mxu0 0
    %204 = vmatprep.subr.bf16.mxu0 0
    %205 = vmatpush2.bf16.msra.mxu0 0
    %206 = vmatprep.subr.bf16.mxu0 0
    %207 = vmatpush2.bf16.msra.mxu0 0
    %208 = vmatprep.subr.bf16.mxu0 0
    %209 = vmatpush2.bf16.msra.mxu0 0
    %210 = vmatprep.subr.bf16.mxu0 0
    %211 = vmatpush2.bf16.msra.mxu0 0
    %212 = vmatprep.subr.bf16.mxu0 0
    %213 = vmatpush2.bf16.msra.mxu0 0
    %214 = vmatprep.mubr.bf16.mxu0 0
    %215 = vmatmul.mubr.bf16.gmra.mxu0 %v180
    %v216 = vpop.f32.mrf.mxu0
    %v217 = vadd.f32 %v167, %v216
    %v218 = vpop.f32.mrf.mxu0
    %v219 = vpop.f32.mrf.mxu0
    %v220 = vadd.f32 %v172, %v219
    %v221 = vpop.f32.mrf.mxu0
    %222 = vdwg.mxu0
    %vm223 = vcmp.ge.f32.partialorder %v217, 0.0
    %vm224 = vcmp.ge.f32.partialorder %v220, 0.0
    %v225 = vmul.f32 %v217, 0.2
    %v226 = vmul.f32 %v220, 0.2
    %v227 = vsel %vm223, %v217, %v225
    %v228 = vsel %vm224, %v220, %v226
    %v229 = vld [vmem:[%s5] sm:$0xf]
    %v230 = vpack.c.bf16 %v228, %v227
    %v231 = vld [vmem:[%s6] sm:$0xff]
    %233 = vset.pattern.permute.xlu0 0
    %234 = vperm.xlu0 %233, %v231
    %v235 = vpop.permute.xlu0 %234
    %vm237 = vcmask 130048
    %v239 = vsel %vm237, %v229, 0
    %241 = vmatprep.subr.bf16.mxu0 0
    %242 = vmatpush1.bf16.msra.mxu0 0
    %243 = vmatprep.subr.bf16.mxu0 0
    %244 = vmatpush1.bf16.msra.mxu0 0
    %245 = vmatprep.subr.bf16.mxu0 0
    %246 = vmatpush1.bf16.msra.mxu0 0
    %247 = vmatprep.subr.bf16.mxu0 0
    %248 = vmatpush1.bf16.msra.mxu0 0
    %249 = vmatprep.subr.bf16.mxu0 0
    %250 = vmatpush1.bf16.msra.mxu0 0
    %251 = vmatprep.subr.bf16.mxu0 0
    %252 = vmatpush1.bf16.msra.mxu0 0
    %253 = vmatprep.subr.bf16.mxu0 0
    %254 = vmatpush1.bf16.msra.mxu0 0
    %255 = vmatprep.subr.bf16.mxu0 0
    %256 = vmatpush1.bf16.msra.mxu0 %v230
    %257 = vmatprep.subr.bf16.mxu0 0
    %258 = vmatpush2.bf16.msra.mxu0 0
    %259 = vmatprep.subr.bf16.mxu0 0
    %260 = vmatpush2.bf16.msra.mxu0 0
    %261 = vmatprep.subr.bf16.mxu0 0
    %262 = vmatpush2.bf16.msra.mxu0 0
    %263 = vmatprep.subr.bf16.mxu0 0
    %264 = vmatpush2.bf16.msra.mxu0 0
    %265 = vmatprep.subr.bf16.mxu0 0
    %266 = vmatpush2.bf16.msra.mxu0 0
    %267 = vmatprep.subr.bf16.mxu0 0
    %268 = vmatpush2.bf16.msra.mxu0 0
    %269 = vmatprep.subr.bf16.mxu0 0
    %270 = vmatpush2.bf16.msra.mxu0 0
    %271 = vmatprep.subr.bf16.mxu0 0
    %272 = vmatpush2.bf16.msra.mxu0 0
    %273 = vmatprep.mubr.bf16.mxu0 0
    %274 = vmatmul.mubr.bf16.gmra.mxu0 %v239
    %v275 = vpop.f32.mrf.mxu0
    %v276 = vadd.f32 %v235, %v275
    %v277 = vpop.f32.mrf.mxu0
    %v278 = vpop.f32.mrf.mxu0
    %v279 = vpop.f32.mrf.mxu0
    %280 = vdwg.mxu0
    %vm281 = vcmp.ge.f32.partialorder %v276, 0.0
    %v282 = vmul.f32 %v276, 0.2
    %v283 = vsel %vm281, %v276, %v282
    %v284 = vld [vmem:[%s7] sm:$0xff]
    %286 = vset.pattern.permute.xlu0 0
    %287 = vperm.xlu0 %286, %v284
    %v288 = vpop.permute.xlu0 %287
    %v290 = vmul.f32 %v288, %v283
    %vm291 = vcmask 64512
    %v292 = vsel %vm291, %v290, 0.0
    %v293 = vrot.slane %v292, 4
    %v294 = vadd.f32 %v292, %v293
    %v295 = vrot.slane %v294, 2
    %v296 = vadd.f32 %v294, %v295
    %v297 = vrot.slane %v296, 1
    %v298 = vadd.f32 %v296, %v297
    %v299 = vld [vmem:[#allocation2] sm:$0x1]
    %301 = vset.pattern.permute.xlu0 0
    %302 = vperm.xlu0 %301, %v299
    %v303 = vpop.permute.xlu0 %302
    %v305 = vlaneseq
    %v306 = vshrl.u32 %v305, 7
    %v307 = vsub.s32 0, %v306
    %v308 = vrot.slane %v303, %v307
    %v309 = vadd.f32 %v298, %v308
    %v310 = vxor.u32 %v309, 2147483648
    %v311 = vmul.f32 %v310, 1.442695
    %v312 = vpow.pop %v311
    %v313 = vadd.f32 %v312, 1.0
    %v314 = vrcp.pop %v313
    %v315 = vmul.f32 1.0, %v314
    %vm316 = vcmask 57344
    %317 = vst.msk [vmem:[#allocation3] sm:$0x1] %vm316, %v315
    // Predicated region
    $region38: #{tpu_custom_call.1} parent=1 // pred_check
      _
    $region39: #{tpu_custom_call.1} parent=1 // pred_check_branch
      %319 = sbr.rel (0) target = $region41
    $region40: #{tpu_custom_call.1} parent=1 // pred_region
      %s321 = ssub.s32 16, 16
      %322 = vsyncadd [#allocation4], %s321
      %s324 = sshll.u32 [#allocation3], 4
      %s325 = int_to_ptr.vmem [resolvable:$true] %s324
      %327 = dma.vmem_to_hbm [thread:$0]  %s325, 16, %s9, [#allocation4]
    $region41: #{tpu_custom_call.1} parent=1 // pred_fallthru
      _
    // Predicated region
    $region42: #{tpu_custom_call.1} parent=1 // pred_check
      _
    $region43: #{tpu_custom_call.1} parent=1 // pred_check_branch
      %329 = sbr.rel (0) target = $region45
    $region44: #{tpu_custom_call.1} parent=1 // pred_region
      %330 = dma.done [#allocation4], 16
    $region45: #{tpu_custom_call.1} parent=1 // pred_fallthru
      _
    %331 = vsyncpa [#allocation4], 1

</llo_original>
